<compile_context>
chip_gen: v7x
topology: tpu7x:2x2x1
jax: 0.10.0
libtpu: 0.0.40
codegen_flags: <defaults>
</compile_context>

<pallas_src>
import math
from itertools import permutations

import numpy as np
import jax
import jax.numpy as jnp
from jax.experimental import pallas as pl
from jax.experimental.pallas import tpu as pltpu

L_MAX = 3
DMAX = 2 * L_MAX + 1          # 7
SUBLANES = 8                  # pad DMAX (7) -> 8 sublanes
LANES = 128                   # pad DMAX*DMAX (49) -> 128 lanes


# ----------------------------------------------------------------------------
# Deterministic CG coefficient construction (synthetic stand-in for the .npz).
# ----------------------------------------------------------------------------
def _cg_scalar(j1, m1, j2, m2, j3, m3):
    """Standard Clebsch-Gordan coefficient <j1 m1 j2 m2 | j3 m3> (integer l)."""
    if m3 != m1 + m2:
        return 0.0
    if not (abs(j1 - j2) <= j3 <= j1 + j2):
        return 0.0
    f = math.factorial
    pref = math.sqrt(
        (2 * j3 + 1)
        * f(j3 + j1 - j2) * f(j3 - j1 + j2) * f(j1 + j2 - j3)
        / f(j1 + j2 + j3 + 1)
    )
    pref *= math.sqrt(
        f(j3 + m3) * f(j3 - m3) * f(j1 - m1) * f(j1 + m1) * f(j2 - m2) * f(j2 + m2)
    )
    kmin = max(0, j2 - j3 - m1, j1 - j3 + m2)
    kmax = min(j1 + j2 - j3, j1 - m1, j2 + m2)
    s = 0.0
    for k in range(kmin, kmax + 1):
        s += (-1) ** k / (
            f(k) * f(j1 + j2 - j3 - k) * f(j1 - m1 - k)
            * f(j2 + m2 - k) * f(j3 - j2 + m1 + k) * f(j3 - j1 - m2 + k)
        )
    return pref * s


def _cg_tensor(l1, l2, l3):
    """CG tensor with shape (2l1+1, 2l2+1, 2l3+1), index = m + l."""
    out = np.zeros((2 * l1 + 1, 2 * l2 + 1, 2 * l3 + 1), dtype=np.float64)
    for m1 in range(-l1, l1 + 1):
        for m2 in range(-l2, l2 + 1):
            for m3 in range(-l3, l3 + 1):
                out[m1 + l1, m2 + l2, m3 + l3] = _cg_scalar(l1, m1, l2, m2, l3, m3)
    return out


def _build_canonical_dict(lmax):
    """Mimic the npz contents: only l1 <= l2 <= l3 (triangle-valid) are stored."""
    tmp = {}
    for l1 in range(lmax + 1):
        for l2 in range(l1, lmax + 1):
            for l3 in range(l2, lmax + 1):
                if abs(l1 - l2) <= l3 <= l1 + l2:
                    tmp[(l1, l2, l3)] = _cg_tensor(l1, l2, l3)
    return tmp


# ----------------------------------------------------------------------------
# Pallas kernel: batched gather of selected CG buffers out of the packed
# (N, 8, 128) table, table fully resident in VMEM, BLOCK_Q queries per step.
# ----------------------------------------------------------------------------
def _make_gather_kernel(block_q):
    def kernel(idx_ref, table_ref, out_ref):
        # idx_ref:   SMEM int32[q_pad]   (scalar-prefetched query buffer ids)
        # table_ref: VMEM (N, 8, 128)    (whole packed table, un-blocked)
        # out_ref:   VMEM (block_q, 8, 128) output block for this grid step
        base = pl.program_id(0) * block_q
        # Fully unrolled in-VMEM copy loop: static output index (Python int),
        # dynamic leading-axis table index from SMEM.  No per-query HBM DMA.
        for b in range(block_q):
            out_ref[b] = table_ref[idx_ref[base + b]]
    return kernel


def gather_cg_blocks(table, indices, block_q=64):
    """Batched gather: table (N, 8, 128) f32, indices (Q,) int32 -> (Q, 8, 128)."""
    q = int(indices.shape[0])
    n, s, l = table.shape
    block_q = max(1, min(block_q, q))
    q_pad = pl.cdiv(q, block_q) * block_q

    # Clamp to valid range (removes OOB hazard), pad queries to the grid size.
    idx = jnp.clip(indices.astype(jnp.int32), 0, n - 1)
    if q_pad != q:
        idx = jnp.concatenate([idx, jnp.zeros((q_pad - q,), dtype=jnp.int32)])

    itemsize = np.dtype(table.dtype).itemsize
    bytes_accessed = n * s * l * itemsize + q_pad * s * l * itemsize + q_pad * 4

    out = pl.pallas_call(
        _make_gather_kernel(block_q),
        out_shape=jax.ShapeDtypeStruct((q_pad, s, l), table.dtype),
        grid_spec=pltpu.PrefetchScalarGridSpec(
            num_scalar_prefetch=1,
            grid=(q_pad // block_q,),
            in_specs=[
                # Whole packed table resident in VMEM (tiny: ~136 KiB for lmax=3).
                pl.BlockSpec(memory_space=pltpu.MemorySpace.VMEM),
            ],
            out_specs=pl.BlockSpec((block_q, s, l), lambda i, idx_ref: (i, 0, 0)),
        ),
        compiler_params=pltpu.CompilerParams(
            # Each output block is written by exactly one grid step and the
            # table is read-only -> legal to shard across v7x's 2 TensorCores.
            dimension_semantics=("parallel",),
        ),
        cost_estimate=pl.CostEstimate(
            flops=0, transcendentals=0, bytes_accessed=int(bytes_accessed)
        ),
    )(idx, table)
    return out[:q] if q_pad != q else out


# ----------------------------------------------------------------------------
# Module-equivalent wrapper.
# ----------------------------------------------------------------------------
class ClebschGordanPallas:
    def __init__(self, lmax=L_MAX):
        tmp = _build_canonical_dict(lmax)
        # Register all permutations, exactly like the PyTorch __init__ loop.
        buffers = {}
        for l123 in tmp.keys():
            for a, b, c in permutations((0, 1, 2)):
                name = "cg_{}_{}_{}".format(l123[a], l123[b], l123[c])
                if name not in buffers:
                    buffers[name] = np.transpose(tmp[l123], (a, b, c))

        self._names = list(buffers.keys())
        self._index = {name: i for i, name in enumerate(self._names)}
        self._np_buffers = buffers  # kept for verification only

        # Fast path: one device constant per buffer, built once (static l's).
        self._consts = {
            name: jnp.asarray(buffers[name].astype(np.float32))
            for name in self._names
        }

        # Packed table for the traced-index Pallas path:
        # each buffer padded to (DMAX, DMAX, DMAX), flattened to (DMAX, DMAX*DMAX),
        # then padded to exactly one (8, 128) vreg tile.
        dmax = 2 * lmax + 1
        self._dmax = dmax
        packed = np.zeros((len(self._names), SUBLANES, LANES), dtype=np.float32)
        for i, name in enumerate(self._names):
            t = buffers[name].astype(np.float32)
            d1, d2, d3 = t.shape
            cube = np.zeros((dmax, dmax, dmax), dtype=np.float32)
            cube[:d1, :d2, :d3] = t
            packed[i, :dmax, : dmax * dmax] = cube.reshape(dmax, dmax * dmax)
        self._table = jnp.asarray(packed)  # (N, 8, 128)

    # --- PyTorch-equivalent forward: static (Python int) l's -> cached constant.
    def __call__(self, l1, l2, l3):
        # Indices/shape fully static at trace time: no kernel, no DMA, no slicing
        # ops — just return the precomputed device constant.
        return self._consts["cg_{}_{}_{}".format(l1, l2, l3)]

    # --- Traced-index path: batch all lookups for a step into ONE pallas_call.
    def gather_padded(self, indices, block_q=64):
        """indices: int32 (Q,) buffer ids -> (Q, 8, 128) padded blocks.

        Block q holds buffer indices[q] as cube.reshape(DMAX, DMAX*DMAX)
        zero-padded to (8, 128).  Consumers that know the static (l1,l2,l3)
        can slice; better yet, keep the padded layout (lane-dense).
        """
        # TODO(synk): in a full HamGNN model, fuse this data-dependent select
        # into the downstream contraction kernel (scalar-prefetch the same
        # index vector there) instead of materializing the CG blocks to HBM.
        return gather_cg_blocks(self._table, indices, block_q=block_q)

    def index_of(self, l1, l2, l3):
        return self._index["cg_{}_{}_{}".format(l1, l2, l3)]

    # pure-numpy reference (for testing)
    def reference(self, l1, l2, l3):
        return self._np_buffers["cg_{}_{}_{}".format(l1, l2, l3)].astype(np.float32)


if __name__ == "__main__":
    # Deterministic setup; PRNGKey only used to pick which triples to query.
    key = jax.random.PRNGKey(0)
    cg = ClebschGordanPallas(lmax=L_MAX)

    test_triples = [(1, 1, 2), (2, 1, 1), (0, 2, 2), (3, 2, 1), (1, 3, 2)]
    # add one pseudo-random valid triple from the registered names
    pick = int(jax.random.randint(key, (), 0, len(cg._names)))
    l1, l2, l3 = (int(s) for s in cg._names[pick].split("_")[1:])
    test_triples.append((l1, l2, l3))

    ok = True

    # 1) Static fast path (module-equivalent forward): cached constants.
    for (a, b, c) in test_triples:
        out = jax.block_until_ready(cg(a, b, c))
        ref = cg.reference(a, b, c)
        if out.shape != (2 * a + 1, 2 * b + 1, 2 * c + 1):
            ok = False
            break
        if not np.allclose(np.asarray(out), ref, atol=1e-6):
            ok = False
            break

    # 2) Traced-index path: ONE batched Pallas gather for all queries.
    if ok:
        indices = jnp.asarray(
            [cg.index_of(a, b, c) for (a, b, c) in test_triples], dtype=jnp.int32
        )
        blocks = jax.block_until_ready(cg.gather_padded(indices))  # (Q, 8, 128)
        blocks_np = np.asarray(blocks)
        for q, (a, b, c) in enumerate(test_triples):
            padded = blocks_np[q, :DMAX, : DMAX * DMAX].reshape(DMAX, DMAX, DMAX)
            got = padded[: 2 * a + 1, : 2 * b + 1, : 2 * c + 1]
            ref = cg.reference(a, b, c)
            if not np.allclose(got, ref, atol=1e-6):
                ok = False
                break
            # padding outside the valid region must be zero
            check = padded.copy()
            check[: 2 * a + 1, : 2 * b + 1, : 2 * c + 1] = 0.0
            if not np.allclose(check, 0.0):
                ok = False
                break

    # 3) Larger batched gather exercising the multi-step grid + Q padding path.
    if ok:
        big_q = 70
        big_idx = jax.random.randint(
            jax.random.PRNGKey(0), (big_q,), 0, len(cg._names), dtype=jnp.int32
        )
        big_blocks = jax.block_until_ready(cg.gather_padded(big_idx, block_q=32))
        table_np = np.asarray(cg._table)
        expect = table_np[np.asarray(big_idx)]
        if big_blocks.shape != (big_q, SUBLANES, LANES):
            ok = False
        elif not np.array_equal(np.asarray(big_blocks), expect):
            ok = False

    if ok:
        print("KERNEL_OK")
    else:
        print("KERNEL_MISMATCH")
</pallas_src>

<mosaic_0001>
module attributes {stable_mosaic.version = 11 : i64} {
  func.func @kernel(%arg0: i32, %arg1: memref<6xi32, #tpu.memory_space<smem>>, %arg2: memref<34x8x128xf32, #tpu.memory_space<vmem>>, %arg3: memref<6x8x128xf32, #tpu.memory_space<vmem>>) attributes {dimension_semantics = [#tpu.dimension_semantics<parallel>], iteration_bounds = array<i64: 1>, scalar_prefetch = 1 : i64, scratch_operands = 0 : i64, tpu.core_type = #tpu.core_type<tc>, window_params = [{pipeline_mode = #tpu.pipeline_mode<synchronous>, transform_indices = @transform_0, window_bounds = array<i64: 34, 8, 128>}, {transform_indices = @transform_1, window_bounds = array<i64: 6, 8, 128>}]} {
    %c6_i32 = arith.constant 6 : i32
    %0 = arith.muli %arg0, %c6_i32 : i32
    %c0_i32 = arith.constant 0 : i32
    %1 = arith.addi %0, %c0_i32 : i32
    %2 = arith.index_cast %1 : i32 to index
    %3 = memref.load %arg1[%2] : memref<6xi32, #tpu.memory_space<smem>>
    %4 = arith.index_cast %3 : i32 to index
    %c0 = arith.constant 0 : index
    %c0_0 = arith.constant 0 : index
    %5 = vector.load %arg2[%4, %c0, %c0_0] : memref<34x8x128xf32, #tpu.memory_space<vmem>>, vector<1x8x128xf32>
    %6 = vector.shape_cast %5 : vector<1x8x128xf32> to vector<8x128xf32>
    %c0_1 = arith.constant 0 : index
    %c0_2 = arith.constant 0 : index
    %c0_3 = arith.constant 0 : index
    %7 = vector.load %arg3[%c0_1, %c0_2, %c0_3] : memref<6x8x128xf32, #tpu.memory_space<vmem>>, vector<1x8x128xf32>
    %8 = vector.shape_cast %7 : vector<1x8x128xf32> to vector<8x128xf32>
    %9 = vector.shape_cast %6 : vector<8x128xf32> to vector<1x8x128xf32>
    tpu.vector_store %arg3[%c0_1, %c0_2, %c0_3], %9 {strides = array<i32>} : memref<6x8x128xf32, #tpu.memory_space<vmem>>, vector<1x8x128xf32>,
    %c1_i32 = arith.constant 1 : i32
    %10 = arith.addi %0, %c1_i32 : i32
    %11 = arith.index_cast %10 : i32 to index
    %12 = memref.load %arg1[%11] : memref<6xi32, #tpu.memory_space<smem>>
    %13 = arith.index_cast %12 : i32 to index
    %c0_4 = arith.constant 0 : index
    %c0_5 = arith.constant 0 : index
    %14 = vector.load %arg2[%13, %c0_4, %c0_5] : memref<34x8x128xf32, #tpu.memory_space<vmem>>, vector<1x8x128xf32>
    %15 = vector.shape_cast %14 : vector<1x8x128xf32> to vector<8x128xf32>
    %c1 = arith.constant 1 : index
    %c0_6 = arith.constant 0 : index
    %c0_7 = arith.constant 0 : index
    %16 = vector.load %arg3[%c1, %c0_6, %c0_7] : memref<6x8x128xf32, #tpu.memory_space<vmem>>, vector<1x8x128xf32>
    %17 = vector.shape_cast %16 : vector<1x8x128xf32> to vector<8x128xf32>
    %18 = vector.shape_cast %15 : vector<8x128xf32> to vector<1x8x128xf32>
    tpu.vector_store %arg3[%c1, %c0_6, %c0_7], %18 {strides = array<i32>} : memref<6x8x128xf32, #tpu.memory_space<vmem>>, vector<1x8x128xf32>,
    %c2_i32 = arith.constant 2 : i32
    %19 = arith.addi %0, %c2_i32 : i32
    %20 = arith.index_cast %19 : i32 to index
    %21 = memref.load %arg1[%20] : memref<6xi32, #tpu.memory_space<smem>>
    %22 = arith.index_cast %21 : i32 to index
    %c0_8 = arith.constant 0 : index
    %c0_9 = arith.constant 0 : index
    %23 = vector.load %arg2[%22, %c0_8, %c0_9] : memref<34x8x128xf32, #tpu.memory_space<vmem>>, vector<1x8x128xf32>
    %24 = vector.shape_cast %23 : vector<1x8x128xf32> to vector<8x128xf32>
    %c2 = arith.constant 2 : index
    %c0_10 = arith.constant 0 : index
    %c0_11 = arith.constant 0 : index
    %25 = vector.load %arg3[%c2, %c0_10, %c0_11] : memref<6x8x128xf32, #tpu.memory_space<vmem>>, vector<1x8x128xf32>
    %26 = vector.shape_cast %25 : vector<1x8x128xf32> to vector<8x128xf32>
    %27 = vector.shape_cast %24 : vector<8x128xf32> to vector<1x8x128xf32>
    tpu.vector_store %arg3[%c2, %c0_10, %c0_11], %27 {strides = array<i32>} : memref<6x8x128xf32, #tpu.memory_space<vmem>>, vector<1x8x128xf32>,
    %c3_i32 = arith.constant 3 : i32
    %28 = arith.addi %0, %c3_i32 : i32
    %29 = arith.index_cast %28 : i32 to index
    %30 = memref.load %arg1[%29] : memref<6xi32, #tpu.memory_space<smem>>
    %31 = arith.index_cast %30 : i32 to index
    %c0_12 = arith.constant 0 : index
    %c0_13 = arith.constant 0 : index
    %32 = vector.load %arg2[%31, %c0_12, %c0_13] : memref<34x8x128xf32, #tpu.memory_space<vmem>>, vector<1x8x128xf32>
    %33 = vector.shape_cast %32 : vector<1x8x128xf32> to vector<8x128xf32>
    %c3 = arith.constant 3 : index
    %c0_14 = arith.constant 0 : index
    %c0_15 = arith.constant 0 : index
    %34 = vector.load %arg3[%c3, %c0_14, %c0_15] : memref<6x8x128xf32, #tpu.memory_space<vmem>>, vector<1x8x128xf32>
    %35 = vector.shape_cast %34 : vector<1x8x128xf32> to vector<8x128xf32>
    %36 = vector.shape_cast %33 : vector<8x128xf32> to vector<1x8x128xf32>
    tpu.vector_store %arg3[%c3, %c0_14, %c0_15], %36 {strides = array<i32>} : memref<6x8x128xf32, #tpu.memory_space<vmem>>, vector<1x8x128xf32>,
    %c4_i32 = arith.constant 4 : i32
    %37 = arith.addi %0, %c4_i32 : i32
    %38 = arith.index_cast %37 : i32 to index
    %39 = memref.load %arg1[%38] : memref<6xi32, #tpu.memory_space<smem>>
    %40 = arith.index_cast %39 : i32 to index
    %c0_16 = arith.constant 0 : index
    %c0_17 = arith.constant 0 : index
    %41 = vector.load %arg2[%40, %c0_16, %c0_17] : memref<34x8x128xf32, #tpu.memory_space<vmem>>, vector<1x8x128xf32>
    %42 = vector.shape_cast %41 : vector<1x8x128xf32> to vector<8x128xf32>
    %c4 = arith.constant 4 : index
    %c0_18 = arith.constant 0 : index
    %c0_19 = arith.constant 0 : index
    %43 = vector.load %arg3[%c4, %c0_18, %c0_19] : memref<6x8x128xf32, #tpu.memory_space<vmem>>, vector<1x8x128xf32>
    %44 = vector.shape_cast %43 : vector<1x8x128xf32> to vector<8x128xf32>
    %45 = vector.shape_cast %42 : vector<8x128xf32> to vector<1x8x128xf32>
    tpu.vector_store %arg3[%c4, %c0_18, %c0_19], %45 {strides = array<i32>} : memref<6x8x128xf32, #tpu.memory_space<vmem>>, vector<1x8x128xf32>,
    %c5_i32 = arith.constant 5 : i32
    %46 = arith.addi %0, %c5_i32 : i32
    %47 = arith.index_cast %46 : i32 to index
    %48 = memref.load %arg1[%47] : memref<6xi32, #tpu.memory_space<smem>>
    %49 = arith.index_cast %48 : i32 to index
    %c0_20 = arith.constant 0 : index
    %c0_21 = arith.constant 0 : index
    %50 = vector.load %arg2[%49, %c0_20, %c0_21] : memref<34x8x128xf32, #tpu.memory_space<vmem>>, vector<1x8x128xf32>
    %51 = vector.shape_cast %50 : vector<1x8x128xf32> to vector<8x128xf32>
    %c5 = arith.constant 5 : index
    %c0_22 = arith.constant 0 : index
    %c0_23 = arith.constant 0 : index
    %52 = vector.load %arg3[%c5, %c0_22, %c0_23] : memref<6x8x128xf32, #tpu.memory_space<vmem>>, vector<1x8x128xf32>
    %53 = vector.shape_cast %52 : vector<1x8x128xf32> to vector<8x128xf32>
    %54 = vector.shape_cast %51 : vector<8x128xf32> to vector<1x8x128xf32>
    tpu.vector_store %arg3[%c5, %c0_22, %c0_23], %54 {strides = array<i32>} : memref<6x8x128xf32, #tpu.memory_space<vmem>>, vector<1x8x128xf32>,
    return
  }
  func.func @transform_0(%arg0: i32, %arg1: memref<6xi32, #tpu.memory_space<smem>>) -> (i32, i32, i32) {
    %c0_i32 = arith.constant 0 : i32
    %c0_i32_0 = arith.constant 0 : i32
    %c0_i32_1 = arith.constant 0 : i32
    %c0_i32_2 = arith.constant 0 : i32
    return %c0_i32, %c0_i32_0, %c0_i32_1 : i32, i32, i32
  }
  func.func @transform_1(%arg0: i32, %arg1: memref<6xi32, #tpu.memory_space<smem>>) -> (i32, i32, i32) {
    %c0_i32 = arith.constant 0 : i32
    %c0_i32_0 = arith.constant 0 : i32
    %c0_i32_1 = arith.constant 0 : i32
    return %arg0, %c0_i32, %c0_i32_0 : i32, i32, i32
  }
}

</mosaic_0001>

<llo_original>
// kernel: tpu_custom_call.1
$region0: #{tpu_custom_call.1}
  #allocation0 [shape = 'u32[]', space=smem, size = 0x4, offset = 0x4, fixed_abs, tag = 'smem constant byte address 0x4 - core index']
  #allocation1 [shape = 'u32[144,128]{1,0:T(1,128)}', space=vmem, size = 0x12000, scoped, tag = 'internal scratch']
  #allocation2 [shape = 's32[1]{0}', space=sflag, size = 0x4, scoped, tag = 'scoped memory for tpu_custom_call.1']
  #allocation3 [shape = 'u8[512]{0}', space=smem, size = 0x200, scoped, tag = 'prefetched SMEM operand 0']
  %s0 = inlined_call_operand.hbm [shape: s32[6], index: 0, kind: input, shape index: {}]
  %s1 = inlined_call_operand.hbm [shape: f32[34,8,128], index: 1, kind: input, shape index: {}]
  %s2 = inlined_call_operand.hbm [shape: f32[6,8,128], index: 2, kind: output, shape index: {}]
  %s3 = sld [smem:[#allocation0]]
  $region18: #{tpu_custom_call.1} parent=0
    _
  %s5 = ssub.s32 1, %s3
  %s6 = scalar_select 0, %s5, %s3
  %8 = dma.hbm_to_smem %s0, 16, [#allocation3], [#allocation2]
  %9 = dma.done [#allocation2], 16
  %10 = sfence
  $region1: #{tpu_custom_call.1} parent=0
    #allocation4 [shape = 'u8[139264]{0}', space=vmem, size = 0x22000, scoped, tag = 'input window, operand 1, single buffered']
    #allocation5 [shape = 's32[1]{0}', space=sflag, size = 0x4, scoped, tag = 'scoped memory for tpu_custom_call.1']
    #allocation6 [shape = 's32[1]{0}', space=sflag, size = 0x4, scoped, tag = 'scoped memory for tpu_custom_call.1']
    #allocation7 [shape = 'u8[24576]{0}', space=vmem, size = 0x6000, scoped, tag = 'output window, operand 0, single buffered']
    %11 = vsyncpa [#allocation5], 0
    %12 = vsyncpa [#allocation6], 0
    // Predicated region
    $region2: #{tpu_custom_call.1} parent=1 // pred_check
      _
    $region3: #{tpu_custom_call.1} parent=1 // pred_check_branch
      %14 = sbr.rel (0) target = $region5
    $region4: #{tpu_custom_call.1} parent=1 // pred_region
      %s16 = ssub.s32 4352, 4352
      %17 = vsyncadd [#allocation5], %s16
      %s18 = sshll.u32 [#allocation4], 4
      %s19 = int_to_ptr.vmem [resolvable:$true] %s18
      %24 = dma.hbm_to_vmem [thread:$0]  %s1, 4352, %s19, [#allocation5], 128, 128, 8
    $region5: #{tpu_custom_call.1} parent=1 // pred_fallthru
      _
    // Predicated region
    $region6: #{tpu_custom_call.1} parent=1 // pred_check
      _
    $region7: #{tpu_custom_call.1} parent=1 // pred_check_branch
      %26 = sbr.rel (0) target = $region9
    $region8: #{tpu_custom_call.1} parent=1 // pred_region
      %27 = dma.done [#allocation5], 4352
    $region9: #{tpu_custom_call.1} parent=1 // pred_fallthru
      _
    %s28 = smul.u32 0, 6
    %s29 = sld [smem:[#allocation3 + %s28]]
    %s30 = smul.u32 %s29, 8
    %s31 = scalar_lea.vmem [#allocation4], %s30
    %v32 = vld [vmem:[%s31] sm:$0xff]
    %33 = vst [vmem:[#allocation7] sm:$0xff] %v32
    %s34 = sadd.s32 %s28, 1
    %s35 = sld [smem:[#allocation3 + %s34]]
    %s36 = smul.u32 %s35, 8
    %s37 = scalar_lea.vmem [#allocation4], %s36
    %v38 = vld [vmem:[%s37] sm:$0xff]
    %s39 = scalar_lea.vmem [#allocation7], 8
    %40 = vst [vmem:[%s39] sm:$0xff] %v38
    %s41 = sadd.s32 %s28, 2
    %s42 = sld [smem:[#allocation3 + %s41]]
    %s43 = smul.u32 %s42, 8
    %s44 = scalar_lea.vmem [#allocation4], %s43
    %v45 = vld [vmem:[%s44] sm:$0xff]
    %s46 = scalar_lea.vmem [#allocation7], 16
    %47 = vst [vmem:[%s46] sm:$0xff] %v45
    %s48 = sadd.s32 %s28, 3
    %s49 = sld [smem:[#allocation3 + %s48]]
    %s50 = smul.u32 %s49, 8
    %s51 = scalar_lea.vmem [#allocation4], %s50
    %v52 = vld [vmem:[%s51] sm:$0xff]
    %s53 = scalar_lea.vmem [#allocation7], 24
    %54 = vst [vmem:[%s53] sm:$0xff] %v52
    %s55 = sadd.s32 %s28, 4
    %s56 = sld [smem:[#allocation3 + %s55]]
    %s57 = smul.u32 %s56, 8
    %s58 = scalar_lea.vmem [#allocation4], %s57
    %v59 = vld [vmem:[%s58] sm:$0xff]
    %s60 = scalar_lea.vmem [#allocation7], 32
    %61 = vst [vmem:[%s60] sm:$0xff] %v59
    %s62 = sadd.s32 %s28, 5
    %s63 = sld [smem:[#allocation3 + %s62]]
    %s64 = smul.u32 %s63, 8
    %s65 = scalar_lea.vmem [#allocation4], %s64
    %v66 = vld [vmem:[%s65] sm:$0xff]
    %s67 = scalar_lea.vmem [#allocation7], 40
    %68 = vst [vmem:[%s67] sm:$0xff] %v66
    // Predicated region
    $region10: #{tpu_custom_call.1} parent=1 // pred_check
      _
    $region11: #{tpu_custom_call.1} parent=1 // pred_check_branch
      %70 = sbr.rel (0) target = $region13
    $region12: #{tpu_custom_call.1} parent=1 // pred_region
      %s72 = ssub.s32 768, 768
      %73 = vsyncadd [#allocation6], %s72
      %s74 = sshll.u32 [#allocation7], 4
      %s75 = int_to_ptr.vmem [resolvable:$true] %s74
      %80 = dma.vmem_to_hbm [thread:$0]  %s75, 768, %s2, [#allocation6], 128, 128, 8
    $region13: #{tpu_custom_call.1} parent=1 // pred_fallthru
      _
    // Predicated region
    $region14: #{tpu_custom_call.1} parent=1 // pred_check
      _
    $region15: #{tpu_custom_call.1} parent=1 // pred_check_branch
      %82 = sbr.rel (0) target = $region17
    $region16: #{tpu_custom_call.1} parent=1 // pred_region
      %83 = dma.done [#allocation6], 768
    $region17: #{tpu_custom_call.1} parent=1 // pred_fallthru
      _
    %84 = vsyncpa [#allocation5], 1
    %85 = vsyncpa [#allocation6], 1

</llo_original>
